<compile_context>
chip_gen: v6e
topology: v6e:2x2x1
jax: 0.10.0
libtpu: 0.0.40
codegen_flags: <defaults>
</compile_context>

<pallas_src>
import functools

import jax
import jax.numpy as jnp
from jax.experimental import pallas as pl
from jax.experimental.pallas import tpu as pltpu

_LANES = 128           # lane width
_SUBLANES = 8          # f32 sublane tile
_MAX_BLOCK_ROWS = 2048 # 1 MiB f32 per input per block


def _ceil_to(x, m):
    return ((x + m - 1) // m) * m


def _ila_partial_kernel(old_ref, new_ref, orig_ref, xy_ref, xx_ref, yy_ref,
                        *, block_rows, valid_rows):
    """One grid step: per-block lane-wise partial sums of x.y, x.x, y.y.

    old/new/orig_ref : VMEM (block_rows, 128) tiles of the flattened inputs
    xy/xx/yy_ref     : VMEM (1, 1, 128) f32 lane-dense partial-sum outputs
    """
    # Upcast in-kernel (free VPU work); keeps HBM traffic at the input dtype.
    orig = orig_ref[...].astype(jnp.float32)
    xd = old_ref[...].astype(jnp.float32) - orig
    yd = new_ref[...].astype(jnp.float32) - orig

    if valid_rows % block_rows != 0:
        # Static (Python) condition: only emitted when the last block is
        # ragged.  Rows past `valid_rows` contain undefined padded data from
        # the partial DMA -> zero their contribution.
        row = (jax.lax.broadcasted_iota(jnp.int32, (block_rows, 1), 0)
               + pl.program_id(0) * block_rows)
        keep = row < valid_rows
        xd = jnp.where(keep, xd, 0.0)
        yd = jnp.where(keep, yd, 0.0)

    # Reduce only the sublane (row) axis; keep results lane-dense (1, 128).
    xy_ref[0] = jnp.sum(xd * yd, axis=0, keepdims=True)
    xx_ref[0] = jnp.sum(xd * xd, axis=0, keepdims=True)
    yy_ref[0] = jnp.sum(yd * yd, axis=0, keepdims=True)


def mid_layer_target_loss(old_attack_mid, new_mid, original_mid, coeff):
    """Pallas equivalent of Mid_layer_target_Loss.forward. Returns f32 (1, 1)."""
    n = old_attack_mid.size

    def prep(a):
        a = a.reshape(-1)
        pad = (-n) % _LANES
        if pad:
            # Rare path (element count not lane-aligned): pad only up to the
            # next multiple of 128.  Identical padding across the 3 inputs
            # keeps the padded diffs exactly zero.
            a = jnp.pad(a, (0, pad))
        return a.reshape(-1, _LANES)

    old_f = prep(old_attack_mid)
    new_f = prep(new_mid)
    orig_f = prep(original_mid)
    m = old_f.shape[0]

    # Block covers the whole array when small (full-dim block is always legal);
    # otherwise use big 2048-row blocks and mask the ragged last block in-kernel.
    block_rows = m if m <= _MAX_BLOCK_ROWS else _MAX_BLOCK_ROWS
    num_blocks = (m + block_rows - 1) // block_rows

    in_spec = pl.BlockSpec((block_rows, _LANES), lambda i: (i, 0))
    out_spec = pl.BlockSpec((1, 1, _LANES), lambda i: (i, 0, 0))
    part_shape = jax.ShapeDtypeStruct((num_blocks, 1, _LANES), jnp.float32)

    kernel = functools.partial(
        _ila_partial_kernel, block_rows=block_rows, valid_rows=m)

    xy_p, xx_p, yy_p = pl.pallas_call(
        kernel,
        out_shape=(part_shape, part_shape, part_shape),
        grid_spec=pltpu.PrefetchScalarGridSpec(
            num_scalar_prefetch=0,
            grid=(num_blocks,),
            in_specs=[in_spec, in_spec, in_spec],
            out_specs=(out_spec, out_spec, out_spec),
        ),
        compiler_params=pltpu.CompilerParams(
            dimension_semantics=("parallel",)),
    )(old_f, new_f, orig_f)

    # Tiny finalize in plain JAX (per perf guidance).
    xy = jnp.sum(xy_p)
    xx = jnp.sum(xx_p)
    yy = jnp.sum(yy_p)
    x_norm = jnp.sqrt(xx)
    y_norm = jnp.sqrt(yy)
    # If y is all zeros: angle_loss = <x/||x||, y> = 0 and magnitude_gain = 0.
    angle = jnp.where(yy == 0.0, 0.0, xy / (x_norm * y_norm))
    mag = y_norm / x_norm
    loss = angle + mag * jnp.asarray(coeff, jnp.float32)
    return loss.reshape(1, 1)


def _reference(old_attack_mid, new_mid, original_mid, coeff):
    x = (old_attack_mid - original_mid).reshape(1, -1).astype(jnp.float32)
    y = (new_mid - original_mid).reshape(1, -1).astype(jnp.float32)
    x_n = jnp.linalg.norm(x)
    y_n = jnp.linalg.norm(y)
    all_zero = jnp.all(y == 0)
    y_unit = jnp.where(all_zero, y, y / jnp.where(y_n == 0, 1.0, y_n))
    angle = (x / x_n) @ y_unit.T
    mag = y_n / x_n
    return angle + mag * coeff


if __name__ == "__main__":
    loss_fn = jax.jit(mid_layer_target_loss)

    # 1) Small NCHW mid-layer feature maps (primary example).
    key = jax.random.PRNGKey(0)
    k1, k2, k3 = jax.random.split(key, 3)
    shape = (2, 4, 16, 16)
    old_attack_mid = jax.random.normal(k1, shape, dtype=jnp.float32)
    original_mid = jax.random.normal(k2, shape, dtype=jnp.float32)
    new_mid = original_mid + 0.1 * jax.random.normal(k3, shape, dtype=jnp.float32)
    coeff = 0.8

    out = jax.block_until_ready(loss_fn(old_attack_mid, new_mid, original_mid, coeff))
    ref = _reference(old_attack_mid, new_mid, original_mid, coeff)
    assert out.shape == (1, 1)
    assert jnp.allclose(out, ref, rtol=1e-5, atol=1e-5), (out, ref)

    # 2) Non-lane-aligned element count (exercises the cheap tail-pad path).
    ka, kb, kc = jax.random.split(jax.random.PRNGKey(1), 3)
    shape2 = (3, 5, 7, 11)  # 1155 elements
    o2 = jax.random.normal(ka, shape2, dtype=jnp.float32)
    g2 = jax.random.normal(kb, shape2, dtype=jnp.float32)
    n2 = g2 + 0.05 * jax.random.normal(kc, shape2, dtype=jnp.float32)
    out2 = jax.block_until_ready(loss_fn(o2, n2, g2, 0.5))
    ref2 = _reference(o2, n2, g2, 0.5)
    assert jnp.allclose(out2, ref2, rtol=1e-5, atol=1e-5), (out2, ref2)

    # 3) Multi-block grid with a ragged last block (exercises the in-kernel mask).
    kd, ke, kf = jax.random.split(jax.random.PRNGKey(2), 3)
    shape3 = (2, 64, 47, 47)  # 282752 elements -> 2209 rows of 128, 2 blocks
    o3 = jax.random.normal(kd, shape3, dtype=jnp.float32)
    g3 = jax.random.normal(ke, shape3, dtype=jnp.float32)
    n3 = g3 + 0.02 * jax.random.normal(kf, shape3, dtype=jnp.float32)
    out3 = jax.block_until_ready(loss_fn(o3, n3, g3, 1.5))
    ref3 = _reference(o3, n3, g3, 1.5)
    assert jnp.allclose(out3, ref3, rtol=1e-4, atol=1e-4), (out3, ref3)

    print("KERNEL_OK")
</pallas_src>

<mosaic_0001>
module attributes {stable_mosaic.version = 11 : i64} {
  func.func @_ila_partial_kernel(%arg0: i32, %arg1: memref<16x128xf32, #tpu.memory_space<vmem>>, %arg2: memref<16x128xf32, #tpu.memory_space<vmem>>, %arg3: memref<16x128xf32, #tpu.memory_space<vmem>>, %arg4: memref<1x1x128xf32, #tpu.memory_space<vmem>>, %arg5: memref<1x1x128xf32, #tpu.memory_space<vmem>>, %arg6: memref<1x1x128xf32, #tpu.memory_space<vmem>>) attributes {dimension_semantics = [#tpu.dimension_semantics<parallel>], iteration_bounds = array<i64: 1>, scalar_prefetch = 0 : i64, scratch_operands = 0 : i64, tpu.core_type = #tpu.core_type<tc>, window_params = [{transform_indices = @transform_0, window_bounds = array<i64: 16, 128>}, {transform_indices = @transform_1, window_bounds = array<i64: 16, 128>}, {transform_indices = @transform_2, window_bounds = array<i64: 16, 128>}, {transform_indices = @transform_3, window_bounds = array<i64: 1, 1, 128>}, {transform_indices = @transform_4, window_bounds = array<i64: 1, 1, 128>}, {transform_indices = @transform_5, window_bounds = array<i64: 1, 1, 128>}]} {
    %c0 = arith.constant 0 : index
    %c0_0 = arith.constant 0 : index
    %0 = vector.load %arg3[%c0, %c0_0] : memref<16x128xf32, #tpu.memory_space<vmem>>, vector<16x128xf32>
    %c0_1 = arith.constant 0 : index
    %c0_2 = arith.constant 0 : index
    %1 = vector.load %arg1[%c0_1, %c0_2] : memref<16x128xf32, #tpu.memory_space<vmem>>, vector<16x128xf32>
    %2 = arith.subf %1, %0 : vector<16x128xf32>
    %c0_3 = arith.constant 0 : index
    %c0_4 = arith.constant 0 : index
    %3 = vector.load %arg2[%c0_3, %c0_4] : memref<16x128xf32, #tpu.memory_space<vmem>>, vector<16x128xf32>
    %4 = arith.subf %3, %0 : vector<16x128xf32>
    %5 = arith.mulf %2, %4 : vector<16x128xf32>
    %cst = arith.constant dense<0.000000e+00> : vector<128xf32>
    %6 = vector.multi_reduction <add>, %5, %cst [0] : vector<16x128xf32> to vector<128xf32>
    %7 = vector.shape_cast %6 : vector<128xf32> to vector<1x128xf32>
    %c0_5 = arith.constant 0 : index
    %c0_6 = arith.constant 0 : index
    %c0_7 = arith.constant 0 : index
    %8 = vector.load %arg4[%c0_5, %c0_6, %c0_7] : memref<1x1x128xf32, #tpu.memory_space<vmem>>, vector<1x1x128xf32>
    %9 = vector.shape_cast %8 : vector<1x1x128xf32> to vector<1x128xf32>
    %10 = vector.shape_cast %7 : vector<1x128xf32> to vector<1x1x128xf32>
    tpu.vector_store %arg4[%c0_5, %c0_6, %c0_7], %10 {strides = array<i32>} : memref<1x1x128xf32, #tpu.memory_space<vmem>>, vector<1x1x128xf32>,
    %11 = arith.mulf %2, %2 : vector<16x128xf32>
    %cst_8 = arith.constant dense<0.000000e+00> : vector<128xf32>
    %12 = vector.multi_reduction <add>, %11, %cst_8 [0] : vector<16x128xf32> to vector<128xf32>
    %13 = vector.shape_cast %12 : vector<128xf32> to vector<1x128xf32>
    %c0_9 = arith.constant 0 : index
    %c0_10 = arith.constant 0 : index
    %c0_11 = arith.constant 0 : index
    %14 = vector.load %arg5[%c0_9, %c0_10, %c0_11] : memref<1x1x128xf32, #tpu.memory_space<vmem>>, vector<1x1x128xf32>
    %15 = vector.shape_cast %14 : vector<1x1x128xf32> to vector<1x128xf32>
    %16 = vector.shape_cast %13 : vector<1x128xf32> to vector<1x1x128xf32>
    tpu.vector_store %arg5[%c0_9, %c0_10, %c0_11], %16 {strides = array<i32>} : memref<1x1x128xf32, #tpu.memory_space<vmem>>, vector<1x1x128xf32>,
    %17 = arith.mulf %4, %4 : vector<16x128xf32>
    %cst_12 = arith.constant dense<0.000000e+00> : vector<128xf32>
    %18 = vector.multi_reduction <add>, %17, %cst_12 [0] : vector<16x128xf32> to vector<128xf32>
    %19 = vector.shape_cast %18 : vector<128xf32> to vector<1x128xf32>
    %c0_13 = arith.constant 0 : index
    %c0_14 = arith.constant 0 : index
    %c0_15 = arith.constant 0 : index
    %20 = vector.load %arg6[%c0_13, %c0_14, %c0_15] : memref<1x1x128xf32, #tpu.memory_space<vmem>>, vector<1x1x128xf32>
    %21 = vector.shape_cast %20 : vector<1x1x128xf32> to vector<1x128xf32>
    %22 = vector.shape_cast %19 : vector<1x128xf32> to vector<1x1x128xf32>
    tpu.vector_store %arg6[%c0_13, %c0_14, %c0_15], %22 {strides = array<i32>} : memref<1x1x128xf32, #tpu.memory_space<vmem>>, vector<1x1x128xf32>,
    return
  }
  func.func @transform_0(%arg0: i32) -> (i32, i32) {
    %c0_i32 = arith.constant 0 : i32
    %c0_i32_0 = arith.constant 0 : i32
    return %arg0, %c0_i32 : i32, i32
  }
  func.func @transform_1(%arg0: i32) -> (i32, i32) {
    %c0_i32 = arith.constant 0 : i32
    %c0_i32_0 = arith.constant 0 : i32
    return %arg0, %c0_i32 : i32, i32
  }
  func.func @transform_2(%arg0: i32) -> (i32, i32) {
    %c0_i32 = arith.constant 0 : i32
    %c0_i32_0 = arith.constant 0 : i32
    return %arg0, %c0_i32 : i32, i32
  }
  func.func @transform_3(%arg0: i32) -> (i32, i32, i32) {
    %c0_i32 = arith.constant 0 : i32
    %c0_i32_0 = arith.constant 0 : i32
    %c0_i32_1 = arith.constant 0 : i32
    return %arg0, %c0_i32, %c0_i32_0 : i32, i32, i32
  }
  func.func @transform_4(%arg0: i32) -> (i32, i32, i32) {
    %c0_i32 = arith.constant 0 : i32
    %c0_i32_0 = arith.constant 0 : i32
    %c0_i32_1 = arith.constant 0 : i32
    return %arg0, %c0_i32, %c0_i32_0 : i32, i32, i32
  }
  func.func @transform_5(%arg0: i32) -> (i32, i32, i32) {
    %c0_i32 = arith.constant 0 : i32
    %c0_i32_0 = arith.constant 0 : i32
    %c0_i32_1 = arith.constant 0 : i32
    return %arg0, %c0_i32, %c0_i32_0 : i32, i32, i32
  }
}

</mosaic_0001>

<llo_original>
// kernel: mid_layer_target_loss.1
$region0: #{mid_layer_target_loss.1}
  #allocation0 [shape = 'u32[]', space=smem, size = 0x4, offset = 0x4, fixed_abs, tag = 'smem constant byte address 0x4 - core index']
  #allocation1 [shape = 'u32[144,128]{1,0:T(1,128)}', space=vmem, size = 0x12000, scoped, tag = 'internal scratch']
  %s0 = inlined_call_operand.vmem [shape: f32[16,128], index: 0, kind: input, shape index: {}]
  %s1 = inlined_call_operand.vmem [shape: f32[16,128], index: 1, kind: input, shape index: {}]
  %s2 = inlined_call_operand.vmem [shape: f32[16,128], index: 2, kind: input, shape index: {}]
  %s3 = inlined_call_operand.vmem [shape: f32[1,1,128], index: 3, kind: output, shape index: {0}]
  %s4 = inlined_call_operand.vmem [shape: f32[1,1,128], index: 4, kind: output, shape index: {1}]
  %s5 = inlined_call_operand.vmem [shape: f32[1,1,128], index: 5, kind: output, shape index: {2}]
  %6 = xla_tuple %s3, %s4, %s5
  %s7 = sld [smem:[#allocation0]]
  $region38: #{mid_layer_target_loss.1} parent=0
    _
  %s9 = ssub.s32 1, %s7
  %s10 = scalar_select 0, %s9, %s7
  // Predicated region
  $region2: #{mid_layer_target_loss.1} parent=0 // pred_check
    _
  $region3: #{mid_layer_target_loss.1} parent=0 // pred_check_branch
    %12 = sbr.rel (0) target = $region5
  $region4: #{mid_layer_target_loss.1} parent=0 // pred_region
    _
  $region5: #{mid_layer_target_loss.1} parent=0 // pred_fallthru
    _
  // Predicated region
  $region6: #{mid_layer_target_loss.1} parent=0 // pred_check
    _
  $region7: #{mid_layer_target_loss.1} parent=0 // pred_check_branch
    %14 = sbr.rel (0) target = $region9
  $region8: #{mid_layer_target_loss.1} parent=0 // pred_region
    _
  $region9: #{mid_layer_target_loss.1} parent=0 // pred_fallthru
    _
  // Predicated region
  $region10: #{mid_layer_target_loss.1} parent=0 // pred_check
    _
  $region11: #{mid_layer_target_loss.1} parent=0 // pred_check_branch
    %16 = sbr.rel (0) target = $region13
  $region12: #{mid_layer_target_loss.1} parent=0 // pred_region
    _
  $region13: #{mid_layer_target_loss.1} parent=0 // pred_fallthru
    _
  %v17 = vld [vmem:[%s2] sm:$0xff]
  %v18 = vld [vmem:[%s2 + $0x8] sm:$0xff]
  %v19 = vld [vmem:[%s0] sm:$0xff]
  %v20 = vld [vmem:[%s0 + $0x8] sm:$0xff]
  %v21 = vsub.f32 %v19, %v17
  %v22 = vsub.f32 %v20, %v18
  %v23 = vld [vmem:[%s1] sm:$0xff]
  %v24 = vld [vmem:[%s1 + $0x8] sm:$0xff]
  %v25 = vsub.f32 %v23, %v17
  %v26 = vsub.f32 %v24, %v18
  %v27 = vmul.f32 %v21, %v25
  %v28 = vmul.f32 %v22, %v26
  %v29 = vadd.f32 %v27, %v28
  %v30 = vrot.slane %v29, 4
  %v31 = vadd.f32 %v29, %v30
  %v32 = vrot.slane %v31, 2
  %v33 = vadd.f32 %v31, %v32
  %v34 = vrot.slane %v33, 1
  %v35 = vadd.f32 %v33, %v34
  %36 = vst [vmem:[%s3] sm:$0x1] %v35
  %v37 = vmul.f32 %v21, %v21
  %v38 = vmul.f32 %v22, %v22
  %v39 = vadd.f32 %v37, %v38
  %v40 = vrot.slane %v39, 4
  %v41 = vadd.f32 %v39, %v40
  %v42 = vrot.slane %v41, 2
  %v43 = vadd.f32 %v41, %v42
  %v44 = vrot.slane %v43, 1
  %v45 = vadd.f32 %v43, %v44
  %46 = vst [vmem:[%s4] sm:$0x1] %v45
  %v47 = vmul.f32 %v25, %v25
  %v48 = vmul.f32 %v26, %v26
  %v49 = vadd.f32 %v47, %v48
  %v50 = vrot.slane %v49, 4
  %v51 = vadd.f32 %v49, %v50
  %v52 = vrot.slane %v51, 2
  %v53 = vadd.f32 %v51, %v52
  %v54 = vrot.slane %v53, 1
  %v55 = vadd.f32 %v53, %v54
  %56 = vst [vmem:[%s5] sm:$0x1] %v55
  // Predicated region
  $region14: #{mid_layer_target_loss.1} parent=0 // pred_check
    _
  $region15: #{mid_layer_target_loss.1} parent=0 // pred_check_branch
    %58 = sbr.rel (0) target = $region17
  $region16: #{mid_layer_target_loss.1} parent=0 // pred_region
    _
  $region17: #{mid_layer_target_loss.1} parent=0 // pred_fallthru
    _
  // Predicated region
  $region18: #{mid_layer_target_loss.1} parent=0 // pred_check
    _
  $region19: #{mid_layer_target_loss.1} parent=0 // pred_check_branch
    %60 = sbr.rel (0) target = $region21
  $region20: #{mid_layer_target_loss.1} parent=0 // pred_region
    _
  $region21: #{mid_layer_target_loss.1} parent=0 // pred_fallthru
    _
  // Predicated region
  $region22: #{mid_layer_target_loss.1} parent=0 // pred_check
    _
  $region23: #{mid_layer_target_loss.1} parent=0 // pred_check_branch
    %62 = sbr.rel (0) target = $region25
  $region24: #{mid_layer_target_loss.1} parent=0 // pred_region
    _
  $region25: #{mid_layer_target_loss.1} parent=0 // pred_fallthru
    _
  // Predicated region
  $region26: #{mid_layer_target_loss.1} parent=0 // pred_check
    _
  $region27: #{mid_layer_target_loss.1} parent=0 // pred_check_branch
    %64 = sbr.rel (0) target = $region29
  $region28: #{mid_layer_target_loss.1} parent=0 // pred_region
    _
  $region29: #{mid_layer_target_loss.1} parent=0 // pred_fallthru
    _
  // Predicated region
  $region30: #{mid_layer_target_loss.1} parent=0 // pred_check
    _
  $region31: #{mid_layer_target_loss.1} parent=0 // pred_check_branch
    %66 = sbr.rel (0) target = $region33
  $region32: #{mid_layer_target_loss.1} parent=0 // pred_region
    _
  $region33: #{mid_layer_target_loss.1} parent=0 // pred_fallthru
    _
  // Predicated region
  $region34: #{mid_layer_target_loss.1} parent=0 // pred_check
    _
  $region35: #{mid_layer_target_loss.1} parent=0 // pred_check_branch
    %68 = sbr.rel (0) target = $region37
  $region36: #{mid_layer_target_loss.1} parent=0 // pred_region
    _
  $region37: #{mid_layer_target_loss.1} parent=0 // pred_fallthru
    _

</llo_original>
